<compile_context>
chip_gen: v5e
topology: v5e:2x2
jax: 0.10.0
libtpu: 0.0.40
codegen_flags: <defaults>
</compile_context>

<pallas_src>
import math

import jax
import jax.numpy as jnp
from jax.experimental import pallas as pl
from jax.experimental.pallas import tpu as pltpu


# Budget for all pipeline buffers (inputs/outputs are double-buffered).
# Kept under the smallest default scoped-VMEM limit (16 MiB on v5e).
_VMEM_BUDGET_BYTES = 12 * 1024 * 1024


def make_positional_encoding_table(d_model: int, max_len: int = 5000) -> jnp.ndarray:
    """Deterministic pe table, identical to the PyTorch __init__ construction."""
    position = jnp.arange(0, max_len, dtype=jnp.float32)[:, None]          # (max_len, 1)
    div_term = jnp.exp(
        jnp.arange(0, d_model, 2, dtype=jnp.float32) * (-math.log(10000.0) / d_model)
    )                                                                       # (d_model/2,)
    angles = position * div_term                                            # (max_len, d_model/2)
    pe = jnp.zeros((max_len, d_model), dtype=jnp.float32)
    pe = pe.at[:, 0::2].set(jnp.sin(angles))
    pe = pe.at[:, 1::2].set(jnp.cos(angles))
    return pe                                                               # (max_len, d_model)


# ---------------------------------------------------------------------------
# Kernels
# ---------------------------------------------------------------------------
def _pe_add_tile_kernel(x_ref, pe_ref, o_ref):
    # x_ref, pe_ref, o_ref: (TS, D) -- plain 2-D add, straight vld/vadd/vst stream.
    o_ref[...] = (x_ref[...] + pe_ref[...]).astype(o_ref.dtype)


def _pe_add_flat_kernel(x_ref, pe_ref, o_ref):
    # x_ref/o_ref: (B, TF); pe_ref: (1, TF) -- cheap sublane broadcast over B.
    o_ref[...] = (x_ref[...] + pe_ref[...]).astype(o_ref.dtype)


# ---------------------------------------------------------------------------
# Tile-size selection (keep double-buffered working set within VMEM budget)
# ---------------------------------------------------------------------------
def _choose_seq_tile(S: int, D: int, itemsize: int) -> int:
    # 6 buffers of TS*D*itemsize: double-buffered x, pe, out.
    max_rows = max(8, _VMEM_BUDGET_BYTES // (6 * D * itemsize))
    if max_rows >= S:
        return S                      # full extent (always legal)
    return max(8, (max_rows // 8) * 8)  # multiple of 8 sublanes


def _choose_flat_tile(B: int, N: int, itemsize: int) -> int:
    # Buffers: double-buffered x + out (4*B*TF) and pe (2*TF).
    denom = (4 * B + 2) * itemsize
    max_cols = max(128, _VMEM_BUDGET_BYTES // denom)
    if max_cols >= N:
        return N                      # full extent (always legal)
    return max(128, (max_cols // 128) * 128)  # multiple of 128 lanes


# ---------------------------------------------------------------------------
# Forward
# ---------------------------------------------------------------------------
@jax.jit
def positional_encoding_forward(x: jnp.ndarray, pe: jnp.ndarray) -> jnp.ndarray:
    """x: (B, S, D).  pe: (max_len, D) float32.  Returns x + pe[:S] (broadcast over B)."""
    B, S, D = x.shape
    max_len = pe.shape[0]
    if S > max_len:
        raise ValueError(f"sequence length {S} exceeds max_len {max_len}")

    pe_slice = pe[:S].astype(x.dtype)              # (S, D), dtype-matched (bf16-safe)
    itemsize = jnp.dtype(x.dtype).itemsize

    if D % 128 == 0:
        # ---- Lane-dense already: tile the sequence dimension. ----
        TS = _choose_seq_tile(S, D, itemsize)
        n_s = pl.cdiv(S, TS)
        return pl.pallas_call(
            _pe_add_tile_kernel,
            out_shape=jax.ShapeDtypeStruct((B, S, D), x.dtype),
            grid_spec=pltpu.PrefetchScalarGridSpec(
                num_scalar_prefetch=0,
                # B innermost: pe block index is constant across consecutive
                # steps -> its re-DMA is elided on revisits.
                grid=(n_s, B),
                in_specs=[
                    # Leading batch dim squeezed out of the kernel view.
                    pl.BlockSpec((None, TS, D), lambda s, b: (b, s, 0)),
                    pl.BlockSpec((TS, D), lambda s, b: (s, 0)),
                ],
                out_specs=pl.BlockSpec((None, TS, D), lambda s, b: (b, s, 0)),
            ),
            compiler_params=pltpu.CompilerParams(
                dimension_semantics=("parallel", "parallel"),
            ),
        )(x, pe_slice)

    # ---- D not a multiple of 128: flatten (S, D) -> lane-dense flat axis. ----
    N = S * D
    x_flat = x.reshape(B, N)
    pe_flat = pe_slice.reshape(1, N)
    TF = _choose_flat_tile(B, N, itemsize)
    n_t = pl.cdiv(N, TF)
    out_flat = pl.pallas_call(
        _pe_add_flat_kernel,
        out_shape=jax.ShapeDtypeStruct((B, N), x.dtype),
        grid_spec=pltpu.PrefetchScalarGridSpec(
            num_scalar_prefetch=0,
            grid=(n_t,),
            in_specs=[
                pl.BlockSpec((B, TF), lambda t: (0, t)),
                pl.BlockSpec((1, TF), lambda t: (0, t)),
            ],
            out_specs=pl.BlockSpec((B, TF), lambda t: (0, t)),
        ),
        compiler_params=pltpu.CompilerParams(
            dimension_semantics=("parallel",),
        ),
    )(x_flat, pe_flat)
    return out_flat.reshape(B, S, D)


if __name__ == "__main__":
    max_len = 64

    # Case 1: demo shape, D=32 (not a multiple of 128) -> lane-dense flattened path.
    B, S, D = 2, 8, 32
    x1 = jax.random.normal(jax.random.PRNGKey(0), (B, S, D), dtype=jnp.float32)
    pe1 = make_positional_encoding_table(D, max_len)
    out1 = jax.block_until_ready(positional_encoding_forward(x1, pe1))
    ref1 = x1 + pe1[None, :S, :]
    assert out1.shape == (B, S, D)
    assert jnp.allclose(out1, ref1, atol=1e-6, rtol=1e-6)

    # Case 2: D=128 (lane-aligned) -> sequence-tiled 3-D path.
    B2, S2, D2 = 2, 16, 128
    x2 = jax.random.normal(jax.random.PRNGKey(0), (B2, S2, D2), dtype=jnp.float32)
    pe2 = make_positional_encoding_table(D2, max_len)
    out2 = jax.block_until_ready(positional_encoding_forward(x2, pe2))
    ref2 = x2 + pe2[None, :S2, :]
    assert out2.shape == (B2, S2, D2)
    assert jnp.allclose(out2, ref2, atol=1e-6, rtol=1e-6)

    print("KERNEL_OK")
</pallas_src>

<mosaic_0001>
module attributes {stable_mosaic.version = 11 : i64} {
  func.func @_pe_add_flat_kernel(%arg0: i32, %arg1: memref<2x256xf32, #tpu.memory_space<vmem>>, %arg2: memref<1x256xf32, #tpu.memory_space<vmem>>, %arg3: memref<2x256xf32, #tpu.memory_space<vmem>>) attributes {dimension_semantics = [#tpu.dimension_semantics<parallel>], iteration_bounds = array<i64: 1>, scalar_prefetch = 0 : i64, scratch_operands = 0 : i64, tpu.core_type = #tpu.core_type<tc>, window_params = [{transform_indices = @transform_0, window_bounds = array<i64: 2, 256>}, {transform_indices = @transform_1, window_bounds = array<i64: 1, 256>}, {transform_indices = @transform_2, window_bounds = array<i64: 2, 256>}]} {
    %c0 = arith.constant 0 : index
    %c0_0 = arith.constant 0 : index
    %0 = vector.load %arg1[%c0, %c0_0] : memref<2x256xf32, #tpu.memory_space<vmem>>, vector<2x256xf32>
    %c0_1 = arith.constant 0 : index
    %c0_2 = arith.constant 0 : index
    %1 = vector.load %arg2[%c0_1, %c0_2] : memref<1x256xf32, #tpu.memory_space<vmem>>, vector<1x256xf32>
    %2 = vector.broadcast %1 : vector<1x256xf32> to vector<2x256xf32>
    %3 = arith.addf %0, %2 : vector<2x256xf32>
    %c0_3 = arith.constant 0 : index
    %c0_4 = arith.constant 0 : index
    %4 = vector.load %arg3[%c0_3, %c0_4] : memref<2x256xf32, #tpu.memory_space<vmem>>, vector<2x256xf32>
    tpu.vector_store %arg3[%c0_3, %c0_4], %3 {strides = array<i32>} : memref<2x256xf32, #tpu.memory_space<vmem>>, vector<2x256xf32>,
    return
  }
  func.func @transform_0(%arg0: i32) -> (i32, i32) {
    %c0_i32 = arith.constant 0 : i32
    %c0_i32_0 = arith.constant 0 : i32
    return %c0_i32, %arg0 : i32, i32
  }
  func.func @transform_1(%arg0: i32) -> (i32, i32) {
    %c0_i32 = arith.constant 0 : i32
    %c0_i32_0 = arith.constant 0 : i32
    return %c0_i32, %arg0 : i32, i32
  }
  func.func @transform_2(%arg0: i32) -> (i32, i32) {
    %c0_i32 = arith.constant 0 : i32
    %c0_i32_0 = arith.constant 0 : i32
    return %c0_i32, %arg0 : i32, i32
  }
}

</mosaic_0001>

<llo_original>
// kernel: positional_encoding_forward.1
$region0: #{positional_encoding_forward.1}
  #allocation0 [shape = 'u32[]', space=smem, size = 0x4, offset = 0x4, fixed_abs, tag = 'smem constant byte address 0x4 - core index']
  #allocation1 [shape = 'u32[72,128]{1,0:T(1,128)}', space=vmem, size = 0x9000, scoped, tag = 'internal scratch']
  %s0 = inlined_call_operand.vmem [shape: f32[2,256], index: 0, kind: input, shape index: {}]
  %s1 = inlined_call_operand.vmem [shape: f32[1,256], index: 1, kind: input, shape index: {}]
  %s2 = inlined_call_operand.vmem [shape: f32[2,256], index: 2, kind: output, shape index: {}]
  %s3 = sld [smem:[#allocation0]]
  $region18: #{positional_encoding_forward.1} parent=0
    _
  %s5 = ssub.s32 1, %s3
  %s6 = scalar_select 0, %s5, %s3
  // Predicated region
  $region2: #{positional_encoding_forward.1} parent=0 // pred_check
    _
  $region3: #{positional_encoding_forward.1} parent=0 // pred_check_branch
    %8 = sbr.rel (0) target = $region5
  $region4: #{positional_encoding_forward.1} parent=0 // pred_region
    _
  $region5: #{positional_encoding_forward.1} parent=0 // pred_fallthru
    _
  // Predicated region
  $region6: #{positional_encoding_forward.1} parent=0 // pred_check
    _
  $region7: #{positional_encoding_forward.1} parent=0 // pred_check_branch
    %10 = sbr.rel (0) target = $region9
  $region8: #{positional_encoding_forward.1} parent=0 // pred_region
    _
  $region9: #{positional_encoding_forward.1} parent=0 // pred_fallthru
    _
  %v11 = vld [vmem:[%s0] sm:$0xf]
  %v12 = vld [vmem:[%s1] sm:$0x3]
  %v14 = vperm.slane %v12, 0
  %v15 = vperm.slane %v12, 1
  %v16 = vrot.slane %v15, 6
  %vm17 = vcmask 1041408
  %v18 = vsel %vm17, %v14, %v16
  %v20 = vadd.f32 %v11, %v18
  %21 = vst [vmem:[%s2] sm:$0xf] %v20
  // Predicated region
  $region10: #{positional_encoding_forward.1} parent=0 // pred_check
    _
  $region11: #{positional_encoding_forward.1} parent=0 // pred_check_branch
    %23 = sbr.rel (0) target = $region13
  $region12: #{positional_encoding_forward.1} parent=0 // pred_region
    _
  $region13: #{positional_encoding_forward.1} parent=0 // pred_fallthru
    _
  // Predicated region
  $region14: #{positional_encoding_forward.1} parent=0 // pred_check
    _
  $region15: #{positional_encoding_forward.1} parent=0 // pred_check_branch
    %25 = sbr.rel (0) target = $region17
  $region16: #{positional_encoding_forward.1} parent=0 // pred_region
    _
  $region17: #{positional_encoding_forward.1} parent=0 // pred_fallthru
    _

</llo_original>
